<compile_context>
chip_gen: v7x
topology: tpu7x:2x2x1
jax: 0.10.0
libtpu: 0.0.40
codegen_flags: <defaults>
</compile_context>

<pallas_src>
import jax
import jax.numpy as jnp
from jax import lax
from jax.experimental import pallas as pl
from jax.experimental.pallas import tpu as pltpu


_MIB = 1024 * 1024
_MN_TILE_TARGET = 512     # multiple of 256 (matches the 2x256x256 MXU on v6e/v7x)
_K_TILE_UNIT = 512


def _round_up(x, m):
    return ((x + m - 1) // m) * m


def _vmem_limit_bytes():
    """Generation-aware scoped-VMEM ceiling (~100 MiB v5e/v6e, ~56 MiB v7x)."""
    try:
        cap = int(pltpu.get_tpu_info().vmem_capacity_bytes)
    except Exception:
        cap = 64 * _MIB  # conservative fallback: v7x physical VMEM per TensorCore
    return int(min(cap - 8 * _MIB, 100 * _MIB))


def _bmm_fullk_kernel(x1_ref, x2_ref, o_ref):
    """Full-K path (no reduction grid axis, no accumulator scratch).

    x1_ref: (K, tm)  = x1[b, :, i*tm:...]
    x2_ref: (tn, K)  = x2[b, j*tn:..., :]
    o_ref : (tm, tn) = out[b, i*tm:..., j*tn:...]
    """
    acc = lax.dot_general(                    # canonical (N,K)@(K,M): zero
        x2_ref[...], x1_ref[...],             # operand transposes on the MXU.
        dimension_numbers=(((1,), (0,)), ((), ())),
        preferred_element_type=jnp.float32,
    )                                         # (tn, tm)
    o_ref[...] = acc.astype(o_ref.dtype).T    # one transpose per output tile


def _bmm_acc_kernel(x1_ref, x2_ref, o_ref, acc_ref):
    """K-tiled path with fp32 VMEM accumulator (K is the innermost grid axis).

    x1_ref: (tk, tm), x2_ref: (tn, tk), o_ref: (tm, tn), acc_ref: (tn, tm) f32.
    """
    k = pl.program_id(3)

    @pl.when(k == 0)
    def _():
        acc_ref[...] = jnp.zeros_like(acc_ref)

    acc_ref[...] += lax.dot_general(
        x2_ref[...], x1_ref[...],
        dimension_numbers=(((1,), (0,)), ((), ())),
        preferred_element_type=jnp.float32,
    )

    @pl.when(k == pl.num_programs(3) - 1)
    def _():
        o_ref[...] = acc_ref[...].astype(o_ref.dtype).T


def _select_k_tiling(K, tm, tn, in_isize, out_isize, budget_bytes):
    """Prefer full-K (drops accumulator + K grid axis); otherwise the largest
    512-multiple K tile that fits the budget while minimizing K padding."""
    fullk_bytes = 2 * (tm + tn) * K * in_isize + 2 * tm * tn * out_isize
    if fullk_bytes <= budget_bytes:
        return K, True
    per_k = 2 * (tm + tn) * in_isize
    fixed = 2 * tm * tn * out_isize + tm * tn * 4       # out dbl-buf + f32 acc
    max_tk = max(_K_TILE_UNIT,
                 ((budget_bytes - fixed) // per_k) // _K_TILE_UNIT * _K_TILE_UNIT)
    k_pad = _round_up(K, _K_TILE_UNIT)
    tk = _K_TILE_UNIT
    t = _K_TILE_UNIT
    while t <= max_tk:
        if k_pad % t == 0:
            tk = t
        t += _K_TILE_UNIT
    return int(tk), False


def model_forward(x1, x2, *, tm=None, tn=None, tk=None, compute_dtype=None):
    """out[b, m, n] = sum_k x1[b, k, m] * x2[b, n, k]   (fused permute + bmm).

    x1: (B, K, M), x2: (B, N, K) -> (B, M, N).
    tm/tn/tk override the automatic tile choice (must be legal TPU blocks).
    compute_dtype (e.g. jnp.bfloat16) optionally casts the operands for the
    high-rate MXU path on v6e/v7x; accumulation stays fp32 either way.
    """
    B, K, M = x1.shape
    B2, N, K2 = x2.shape
    assert B == B2 and K == K2, "bmm inner dims must match after the permutes"

    out_dtype = jnp.result_type(x1.dtype, x2.dtype)
    if compute_dtype is not None:
        x1 = x1.astype(compute_dtype)
        x2 = x2.astype(compute_dtype)

    in_isize = jnp.dtype(x1.dtype).itemsize
    out_isize = jnp.dtype(out_dtype).itemsize

    vmem_limit = _vmem_limit_bytes()
    budget = vmem_limit - 4 * _MIB      # headroom for Mosaic internal scratch

    # M/N tiles: <= 512, multiples of 128 (lane-dense output stores); edge
    # blocks are partial and Pallas masks the out-of-bounds stores.
    tm = (M if M <= _MN_TILE_TARGET else _MN_TILE_TARGET) if tm is None else int(tm)
    tn = (N if N <= _MN_TILE_TARGET else _MN_TILE_TARGET) if tn is None else int(tn)

    # K tile: full-K when it fits the double-buffered VMEM budget.
    if tk is None:
        tk, full_k = _select_k_tiling(K, tm, tn, in_isize, out_isize, budget)
    else:
        tk = int(tk)
        full_k = tk >= K
        tk = K if full_k else tk

    gm = pl.cdiv(M, tm)
    gn = pl.cdiv(N, tn)

    # v7x has two TensorCores: keep >= 2 parallel grid iterations so both get
    # work (the K axis is "arbitrary" and cannot be sharded). Negligible cost
    # on single-TC generations.
    if B * gm * gn == 1 and M > 128:
        tm = _round_up(pl.cdiv(M, 2), 128)
        gm = pl.cdiv(M, tm)

    # Zero-pad K so the reduction tile divides it exactly (zero padding is
    # exact for the matmul reduction; M/N padding is unnecessary because the
    # partial output blocks are masked on store).
    if not full_k:
        Kp = _round_up(K, tk)
        if Kp != K:
            x1 = jnp.pad(x1, ((0, 0), (0, Kp - K), (0, 0)))
            x2 = jnp.pad(x2, ((0, 0), (0, 0), (0, Kp - K)))
    else:
        Kp = K
    gk = Kp // tk

    # Cost estimate with re-streaming: x1 is read once per N tile, x2 once per
    # M tile.
    cost = pl.CostEstimate(
        flops=2 * B * M * N * K,
        transcendentals=0,
        bytes_accessed=int(x1.size * in_isize * gn
                           + x2.size * in_isize * gm
                           + B * M * N * out_isize),
    )

    if full_k:
        grid = (B, gm, gn)
        grid_spec = pltpu.PrefetchScalarGridSpec(
            num_scalar_prefetch=0,
            grid=grid,
            in_specs=[
                pl.BlockSpec((pl.Squeezed(), Kp, tm), lambda b, i, j: (b, 0, i)),
                pl.BlockSpec((pl.Squeezed(), tn, Kp), lambda b, i, j: (b, j, 0)),
            ],
            out_specs=pl.BlockSpec((pl.Squeezed(), tm, tn),
                                   lambda b, i, j: (b, i, j)),
        )
        kernel = _bmm_fullk_kernel
        semantics = ("parallel", "parallel", "parallel")
    else:
        grid = (B, gm, gn, gk)
        grid_spec = pltpu.PrefetchScalarGridSpec(
            num_scalar_prefetch=0,
            grid=grid,
            in_specs=[
                pl.BlockSpec((pl.Squeezed(), tk, tm),
                             lambda b, i, j, k: (b, k, i)),
                pl.BlockSpec((pl.Squeezed(), tn, tk),
                             lambda b, i, j, k: (b, j, k)),
            ],
            out_specs=pl.BlockSpec((pl.Squeezed(), tm, tn),
                                   lambda b, i, j, k: (b, i, j)),
            scratch_shapes=[pltpu.VMEM((tn, tm), jnp.float32)],
        )
        kernel = _bmm_acc_kernel
        semantics = ("parallel", "parallel", "parallel", "arbitrary")

    return pl.pallas_call(
        kernel,
        out_shape=jax.ShapeDtypeStruct((B, M, N), out_dtype),
        grid_spec=grid_spec,
        compiler_params=pltpu.CompilerParams(
            dimension_semantics=semantics,
            vmem_limit_bytes=vmem_limit,
        ),
        cost_estimate=cost,
    )(x1, x2)


if __name__ == "__main__":
    root = jax.random.PRNGKey(0)

    def run_case(subkey, B, K, M, N, **tiles):
        k1, k2 = jax.random.split(subkey)
        x1 = 6.0 * jax.random.normal(k1, (B, K, M), dtype=jnp.float32)
        x2 = 5.0 * jax.random.normal(k2, (B, N, K), dtype=jnp.float32)
        out = jax.block_until_ready(model_forward(x1, x2, **tiles))
        ref = jnp.einsum("bkm,bnk->bmn", x1, x2)   # pure-JAX permute+bmm ref
        assert out.shape == (B, M, N)
        rel = float(jnp.max(jnp.abs(out - ref)) / (jnp.max(jnp.abs(ref)) + 1e-6))
        assert rel < 2e-3, f"(B={B},K={K},M={M},N={N}) rel err {rel}"

    keys = jax.random.split(root, 3)
    # Tiny shapes matching the PyTorch reference (K made consistent for bmm).
    run_case(keys[0], B=4, K=3, M=5, N=2)
    # Modest shapes: exercises the full-K fast path (no accumulator, 3-D grid).
    run_case(keys[1], B=2, K=1024, M=512, N=256)
    # Forced small tiles: exercises the K-tiled accumulator path, partial
    # (masked) M/N edge blocks and the zero-padded K remainder.
    run_case(keys[2], B=2, K=384, M=320, N=192, tm=256, tn=128, tk=256)

    print("KERNEL_OK")
</pallas_src>

<mosaic_0001>
module attributes {stable_mosaic.version = 11 : i64} {
  func.func @_bmm_fullk_kernel(%arg0: i32, %arg1: i32, %arg2: i32, %arg3: memref<1x3x5xf32, #tpu.memory_space<vmem>>, %arg4: memref<1x2x3xf32, #tpu.memory_space<vmem>>, %arg5: memref<1x5x2xf32, #tpu.memory_space<vmem>>) attributes {dimension_semantics = [#tpu.dimension_semantics<parallel>, #tpu.dimension_semantics<parallel>, #tpu.dimension_semantics<parallel>], iteration_bounds = array<i64: 4, 1, 1>, scalar_prefetch = 0 : i64, scratch_operands = 0 : i64, tpu.core_type = #tpu.core_type<tc>, window_params = [{transform_indices = @transform_0, window_bounds = array<i64: 1, 3, 5>}, {transform_indices = @transform_1, window_bounds = array<i64: 1, 2, 3>}, {transform_indices = @transform_2, window_bounds = array<i64: 1, 5, 2>}]} {
    %c0 = arith.constant 0 : index
    %c0_0 = arith.constant 0 : index
    %c0_1 = arith.constant 0 : index
    %0 = vector.load %arg4[%c0, %c0_0, %c0_1] : memref<1x2x3xf32, #tpu.memory_space<vmem>>, vector<1x2x3xf32>
    %1 = vector.shape_cast %0 : vector<1x2x3xf32> to vector<2x3xf32>
    %c0_2 = arith.constant 0 : index
    %c0_3 = arith.constant 0 : index
    %c0_4 = arith.constant 0 : index
    %2 = vector.load %arg3[%c0_2, %c0_3, %c0_4] : memref<1x3x5xf32, #tpu.memory_space<vmem>>, vector<1x3x5xf32>
    %3 = vector.shape_cast %2 : vector<1x3x5xf32> to vector<3x5xf32>
    %cst = arith.constant dense<0.000000e+00> : vector<2x5xf32>
    %4 = tpu.matmul %1, %3, %cst {dimension_numbers = #tpu.dot_dimension_numbers<[1], [0], [0], [1], [0, 0, 1, 1], [], []>} : vector<2x3xf32>, vector<3x5xf32>, vector<2x5xf32> -> vector<2x5xf32>
    %5 = tpu.transpose %4, [1, 0] : vector<2x5xf32> -> vector<5x2xf32>
    %c0_5 = arith.constant 0 : index
    %c0_6 = arith.constant 0 : index
    %c0_7 = arith.constant 0 : index
    %6 = vector.load %arg5[%c0_5, %c0_6, %c0_7] : memref<1x5x2xf32, #tpu.memory_space<vmem>>, vector<1x5x2xf32>
    %7 = vector.shape_cast %6 : vector<1x5x2xf32> to vector<5x2xf32>
    %8 = vector.shape_cast %5 : vector<5x2xf32> to vector<1x5x2xf32>
    tpu.vector_store %arg5[%c0_5, %c0_6, %c0_7], %8 {strides = array<i32>} : memref<1x5x2xf32, #tpu.memory_space<vmem>>, vector<1x5x2xf32>,
    return
  }
  func.func @transform_0(%arg0: i32, %arg1: i32, %arg2: i32) -> (i32, i32, i32) {
    %c0_i32 = arith.constant 0 : i32
    %c0_i32_0 = arith.constant 0 : i32
    return %arg0, %c0_i32, %arg1 : i32, i32, i32
  }
  func.func @transform_1(%arg0: i32, %arg1: i32, %arg2: i32) -> (i32, i32, i32) {
    %c0_i32 = arith.constant 0 : i32
    %c0_i32_0 = arith.constant 0 : i32
    return %arg0, %arg2, %c0_i32 : i32, i32, i32
  }
  func.func @transform_2(%arg0: i32, %arg1: i32, %arg2: i32) -> (i32, i32, i32) {
    %c0_i32 = arith.constant 0 : i32
    return %arg0, %arg1, %arg2 : i32, i32, i32
  }
}

</mosaic_0001>

<llo_original>
// kernel: tpu_custom_call.1
$region0: #{tpu_custom_call.1}
  #allocation0 [shape = 'u32[]', space=smem, size = 0x4, offset = 0x4, fixed_abs, tag = 'smem constant byte address 0x4 - core index']
  #allocation1 [shape = 'u32[144,128]{1,0:T(1,128)}', space=vmem, size = 0x12000, scoped, tag = 'internal scratch']
  %s0 = inlined_call_operand.vmem [shape: f32[4,3,5], index: 0, kind: input, shape index: {}]
  %s1 = inlined_call_operand.vmem [shape: f32[4,2,3], index: 1, kind: input, shape index: {}]
  %s2 = inlined_call_operand.vmem [shape: f32[4,5,2], index: 2, kind: output, shape index: {}]
  %s3 = sld [smem:[#allocation0]]
  $region41: #{tpu_custom_call.1} parent=0
    _
  %s5 = ssub.s32 1, %s3
  %s6 = scalar_select 0, %s5, %s3
  loop: start=0, step=1, limit=6
  $region2: #{tpu_custom_call.1} parent=0 // loop_pre_header
    _
  $region3: #{tpu_custom_call.1} parent=0 // loop_header
    %s8 = sphi 0, %s12
    %p9 = scmp.ge.s32.totalorder %s8, 6
    %s15 = sphi 0, %s34
    %s16 = sphi 0, %s30
    %s17 = sphi 0, %s26
    %s18 = sphi 0, %s15
    %s19 = sphi 0, %s16
    %s20 = sphi 0, %s17
    %s21 = sphi 0, %s18
    %s22 = sphi 0, %s19
    %s23 = sphi 0, %s20
    %s39 = sphi 0, %s41
    %s42 = sphi 0, %s39
    %s43 = sphi 0, %s42
    %s59 = sphi 0, %s43
    %s67 = sphi 0, %s69
    %s70 = sphi 0, %s67
    %s71 = sphi 0, %s70
    %s87 = sphi 0, %s71
    %s97 = sphi 0, %s99
    %s100 = sphi 0, %s97
    %s101 = sphi 0, %s100
    %s117 = sphi 0, %s101
  $region4: #{tpu_custom_call.1} parent=0 // loop_header_branch
    %11 = sbr.rel (%p9) target = $region8
  $region5: #{tpu_custom_call.1} parent=0 // loop_body
    %s13 = ssub.s32 %s8, 1
    %s14 = ssub.s32 %s8, 2
    %s24 = sadd.s32 1, %s17
    %p25 = scmp.ge.s32.totalorder %s24, 1
    %s26 = scalar_select %p25, 0, %s24
    %s27 = sadd.s32 1, %s16
    %s28 = scalar_select %p25, %s27, %s16
    %p29 = scmp.ge.s32.totalorder %s28, 1
    %s30 = scalar_select %p29, 0, %s28
    %s31 = sadd.s32 1, %s15
    %s32 = scalar_select %p29, %s31, %s15
    %p33 = scmp.ge.s32.totalorder %s32, 4
    %s34 = scalar_select %p33, 0, %s32
    %s35 = ssub.s32 %s15, %s34
    %s36 = ssub.s32 %s16, %s30
    %s37 = sor.u32 %s35, %s36
    %p38 = scmp.eq.s32.totalorder %s37, 0
    %s40 = sadd.s32 %s39, 1
    %s41 = scalar_select %p38, %s39, %s40
    %p44 = pneg %p38
    %p45 = scmp.eq.s32.totalorder %s8, 3
    %p46 = por %p44, %p45
    %p47 = scmp.ne.s32.totalorder %s39, %s42
    %p48 = scmp.eq.s32.totalorder %s8, 0
    %p49 = por %p47, %p48
    %p50 = scmp.ne.s32.totalorder %s39, %s42
    %p51 = scmp.eq.s32.totalorder %s13, 3
    %p52 = por %p50, %p51
    %p53 = scmp.ne.s32.totalorder %s42, %s43
    %p54 = scmp.eq.s32.totalorder %s13, 0
    %p55 = por %p53, %p54
    %p56 = scmp.ne.s32.totalorder %s42, %s43
    %p57 = scmp.eq.s32.totalorder %s14, 3
    %p58 = por %p56, %p57
    %p60 = scmp.ne.s32.totalorder %s43, %s59
    %p61 = scmp.eq.s32.totalorder %s14, 0
    %p62 = por %p60, %p61
    %s63 = ssub.s32 %s15, %s34
    %s64 = ssub.s32 %s17, %s26
    %s65 = sor.u32 %s63, %s64
    %p66 = scmp.eq.s32.totalorder %s65, 0
    %s68 = sadd.s32 %s67, 1
    %s69 = scalar_select %p66, %s67, %s68
    %p72 = pneg %p66
    %p73 = scmp.eq.s32.totalorder %s8, 3
    %p74 = por %p72, %p73
    %p75 = scmp.ne.s32.totalorder %s67, %s70
    %p76 = scmp.eq.s32.totalorder %s8, 0
    %p77 = por %p75, %p76
    %p78 = scmp.ne.s32.totalorder %s67, %s70
    %p79 = scmp.eq.s32.totalorder %s13, 3
    %p80 = por %p78, %p79
    %p81 = scmp.ne.s32.totalorder %s70, %s71
    %p82 = scmp.eq.s32.totalorder %s13, 0
    %p83 = por %p81, %p82
    %p84 = scmp.ne.s32.totalorder %s70, %s71
    %p85 = scmp.eq.s32.totalorder %s14, 3
    %p86 = por %p84, %p85
    %p88 = scmp.ne.s32.totalorder %s71, %s87
    %p89 = scmp.eq.s32.totalorder %s14, 0
    %p90 = por %p88, %p89
    %s91 = ssub.s32 %s15, %s34
    %s92 = ssub.s32 %s16, %s30
    %s93 = sor.u32 %s91, %s92
    %s94 = ssub.s32 %s17, %s26
    %s95 = sor.u32 %s93, %s94
    %p96 = scmp.eq.s32.totalorder %s95, 0
    %s98 = sadd.s32 %s97, 1
    %s99 = scalar_select %p96, %s97, %s98
    %p102 = pneg %p96
    %p103 = scmp.eq.s32.totalorder %s8, 3
    %p104 = por %p102, %p103
    %p105 = scmp.ne.s32.totalorder %s97, %s100
    %p106 = scmp.eq.s32.totalorder %s8, 0
    %p107 = por %p105, %p106
    %p108 = scmp.ne.s32.totalorder %s97, %s100
    %p109 = scmp.eq.s32.totalorder %s13, 3
    %p110 = por %p108, %p109
    %p111 = scmp.ne.s32.totalorder %s100, %s101
    %p112 = scmp.eq.s32.totalorder %s13, 0
    %p113 = por %p111, %p112
    %p114 = scmp.ne.s32.totalorder %s100, %s101
    %p115 = scmp.eq.s32.totalorder %s14, 3
    %p116 = por %p114, %p115
    %p118 = scmp.ne.s32.totalorder %s101, %s117
    %p119 = scmp.eq.s32.totalorder %s14, 0
    %p120 = por %p118, %p119
    %p121 = scmp.le.s32.totalorder 1, %s8
    %p122 = scmp.lt.s32.totalorder %s8, 5
    %p123 = pnand %p121, %p122
    %p124 = pneg %p123
    // Predicated region
    $region9: #{tpu_custom_call.1} parent=5 // pred_check
      _
    $region10: #{tpu_custom_call.1} parent=5 // pred_check_branch
      %126 = sbr.rel (%p123) target = $region12
    $region11: #{tpu_custom_call.1} parent=5 // pred_region
      %s127 = ssub.s32 %s8, 1
    $region12: #{tpu_custom_call.1} parent=5 // pred_fallthru
      _
    %p128 = scmp.lt.s32.totalorder %s8, 4
    // Predicated region
    $region13: #{tpu_custom_call.1} parent=5 // pred_check
      %p129 = pneg %p128
    $region14: #{tpu_custom_call.1} parent=5 // pred_check_branch
      %131 = sbr.rel (%p129) target = $region16
    $region15: #{tpu_custom_call.1} parent=5 // pred_region
      // Predicated region
      $region17: #{tpu_custom_call.1} parent=15 // pred_check
        %p132 = pneg %p49
      $region18: #{tpu_custom_call.1} parent=15 // pred_check_branch
        %134 = sbr.rel (%p132) target = $region20
      $region19: #{tpu_custom_call.1} parent=15 // pred_region
        %p135 = scmp.lt.s32.totalorder %s15, 3
        %s136 = scalar_select %p135, %s15, 3
        %p137 = scmp.lt.s32.totalorder %s16, 0
        %s138 = scalar_select %p137, %s16, 0
        %s139 = sadd.s32 %s138, %s136
        %s140 = smul.addr %s139, 4
        %s141 = scalar_lea.vmem %s0, %s140
      $region20: #{tpu_custom_call.1} parent=15 // pred_fallthru
        _
      // Predicated region
      $region21: #{tpu_custom_call.1} parent=15 // pred_check
        %p142 = pneg %p77
      $region22: #{tpu_custom_call.1} parent=15 // pred_check_branch
        %144 = sbr.rel (%p142) target = $region24
      $region23: #{tpu_custom_call.1} parent=15 // pred_region
        %p145 = scmp.lt.s32.totalorder %s15, 3
        %s146 = scalar_select %p145, %s15, 3
        %p147 = scmp.lt.s32.totalorder %s17, 0
        %s148 = scalar_select %p147, %s17, 0
        %s149 = sadd.s32 %s148, %s146
        %s150 = smul.addr %s149, 2
        %s151 = scalar_lea.vmem %s1, %s150
      $region24: #{tpu_custom_call.1} parent=15 // pred_fallthru
        _
    $region16: #{tpu_custom_call.1} parent=5 // pred_fallthru
      _
    %p152 = scmp.le.s32.totalorder 1, %s8
    %p153 = scmp.lt.s32.totalorder %s8, 5
    %p154 = pnand %p152, %p153
    %p155 = pneg %p154
    // Predicated region
    $region25: #{tpu_custom_call.1} parent=5 // pred_check
      _
    $region26: #{tpu_custom_call.1} parent=5 // pred_check_branch
      %157 = sbr.rel (%p154) target = $region28
    $region27: #{tpu_custom_call.1} parent=5 // pred_region
      %s158 = ssub.s32 %s8, 1
      %p159 = scmp.lt.s32.totalorder %s18, 3
      %s160 = scalar_select %p159, %s18, 3
      %p161 = scmp.lt.s32.totalorder %s19, 0
      %s162 = scalar_select %p161, %s19, 0
      %s163 = sadd.s32 %s162, %s160
      %s164 = smul.addr %s163, 4
      %s165 = scalar_lea.vmem %s0, %s164
      %p166 = pneg %p55
      %p167 = pneg %p52
      %p168 = scmp.lt.s32.totalorder %s18, 3
      %s169 = scalar_select %p168, %s18, 3
      %p170 = scmp.lt.s32.totalorder %s20, 0
      %s171 = scalar_select %p170, %s20, 0
      %s172 = sadd.s32 %s171, %s169
      %s173 = smul.addr %s172, 2
      %s174 = scalar_lea.vmem %s1, %s173
      %p175 = pneg %p83
      %p176 = pneg %p80
      %p177 = pneg %p113
      %p178 = pneg %p110
      %p179 = scmp.lt.s32.totalorder %s18, 3
      %s180 = scalar_select %p179, %s18, 3
      %p181 = scmp.lt.s32.totalorder %s19, 0
      %s182 = scalar_select %p181, %s19, 0
      %p183 = scmp.lt.s32.totalorder %s20, 0
      %s184 = scalar_select %p183, %s20, 0
      %s185 = sadd.s32 %s184, %s182
      %s186 = sadd.s32 %s185, %s180
      %s187 = smul.addr %s186, 8
      %s188 = scalar_lea.vmem %s2, %s187
      %p189 = scmp.lt.s32.totalorder %s18, 3
      %s190 = scalar_select %p189, %s18, 3
      %p191 = scmp.lt.s32.totalorder %s19, 0
      %s192 = scalar_select %p191, %s19, 0
      %s193 = sadd.s32 %s192, %s190
      %s194 = smul.addr %s193, 4
      %s195 = scalar_lea.vmem %s0, %s194
      %p196 = scmp.lt.s32.totalorder %s18, 3
      %s197 = scalar_select %p196, %s18, 3
      %p198 = scmp.lt.s32.totalorder %s20, 0
      %s199 = scalar_select %p198, %s20, 0
      %s200 = sadd.s32 %s199, %s197
      %s201 = smul.addr %s200, 2
      %s202 = scalar_lea.vmem %s1, %s201
      %p203 = scmp.lt.s32.totalorder %s18, 3
      %s204 = scalar_select %p203, %s18, 3
      %p205 = scmp.lt.s32.totalorder %s19, 0
      %s206 = scalar_select %p205, %s19, 0
      %p207 = scmp.lt.s32.totalorder %s20, 0
      %s208 = scalar_select %p207, %s20, 0
      %s209 = sadd.s32 %s208, %s206
      %s210 = sadd.s32 %s209, %s204
      %s211 = smul.addr %s210, 8
      %s212 = scalar_lea.vmem %s2, %s211
      %v213 = vld [vmem:[%s202] sm:$0x3]
      %v214 = vld [vmem:[%s195] sm:$0x7]
      %vm215 = vcmask 23552
      %v217 = vsel %vm215, %v213, 0
      %vm219 = vcmask 1042432
      %v221 = vsel %vm219, %v214, 0
      %223 = vmatprep.subr.mxu0 0.0
      %224 = vmatpush1.msra.mxu0 %v221
      %225 = vmatprep.subr.mxu0 0.0
      %226 = vmatpush1.msra.mxu0 0.0
      %227 = vmatprep.subr.mxu0 0.0
      %228 = vmatpush1.msra.mxu0 0.0
      %229 = vmatprep.subr.mxu0 0.0
      %230 = vmatpush1.msra.mxu0 0.0
      %231 = vmatprep.subr.mxu0 0.0
      %232 = vmatpush1.msra.mxu0 0.0
      %233 = vmatprep.subr.mxu0 0.0
      %234 = vmatpush1.msra.mxu0 0.0
      %235 = vmatprep.subr.mxu0 0.0
      %236 = vmatpush1.msra.mxu0 0.0
      %237 = vmatprep.subr.mxu0 0.0
      %238 = vmatpush1.msra.mxu0 0.0
      %239 = vmatprep.subr.mxu0 0.0
      %240 = vmatpush1.msra.mxu0 0.0
      %241 = vmatprep.subr.mxu0 0.0
      %242 = vmatpush1.msra.mxu0 0.0
      %243 = vmatprep.subr.mxu0 0.0
      %244 = vmatpush1.msra.mxu0 0.0
      %245 = vmatprep.subr.mxu0 0.0
      %246 = vmatpush1.msra.mxu0 0.0
      %247 = vmatprep.subr.mxu0 0.0
      %248 = vmatpush1.msra.mxu0 0.0
      %249 = vmatprep.subr.mxu0 0.0
      %250 = vmatpush1.msra.mxu0 0.0
      %251 = vmatprep.subr.mxu0 0.0
      %252 = vmatpush1.msra.mxu0 0.0
      %253 = vmatprep.subr.mxu0 0.0
      %254 = vmatpush1.msra.mxu0 0.0
      %255 = vmatprep.subr.mxu0 0.0
      %256 = vmatpush1.msra.mxu0 0.0
      %257 = vmatprep.subr.mxu0 0.0
      %258 = vmatpush1.msra.mxu0 0.0
      %259 = vmatprep.subr.mxu0 0.0
      %260 = vmatpush1.msra.mxu0 0.0
      %261 = vmatprep.subr.mxu0 0.0
      %262 = vmatpush1.msra.mxu0 0.0
      %263 = vmatprep.subr.mxu0 0.0
      %264 = vmatpush1.msra.mxu0 0.0
      %265 = vmatprep.subr.mxu0 0.0
      %266 = vmatpush1.msra.mxu0 0.0
      %267 = vmatprep.subr.mxu0 0.0
      %268 = vmatpush1.msra.mxu0 0.0
      %269 = vmatprep.subr.mxu0 0.0
      %270 = vmatpush1.msra.mxu0 0.0
      %271 = vmatprep.subr.mxu0 0.0
      %272 = vmatpush1.msra.mxu0 0.0
      %273 = vmatprep.subr.mxu0 0.0
      %274 = vmatpush1.msra.mxu0 0.0
      %275 = vmatprep.subr.mxu0 0.0
      %276 = vmatpush1.msra.mxu0 0.0
      %277 = vmatprep.subr.mxu0 0.0
      %278 = vmatpush1.msra.mxu0 0.0
      %279 = vmatprep.subr.mxu0 0.0
      %280 = vmatpush1.msra.mxu0 0.0
      %281 = vmatprep.subr.mxu0 0.0
      %282 = vmatpush1.msra.mxu0 0.0
      %283 = vmatprep.subr.mxu0 0.0
      %284 = vmatpush1.msra.mxu0 0.0
      %285 = vmatprep.subr.mxu0 0.0
      %286 = vmatpush1.msra.mxu0 0.0
      %287 = vmatprep.mubr.f32.mxu0 0.0
      %288 = vmatmul.mubr.f32.gmra.mrb[0].mxu0 %v217
      %v289 = vpop.f32.mrb[0].mxu0
      %v290 = vadd.f32 0.0, %v289
      %v291 = vpop.f32.mrb[0].mxu0
      %292 = vdwg.mxu0
      %293 = vxpose.xlu0.b32.start [1/16] %v290, 128
      %294 = vxpose.xlu0.b32.cont [2/16] 0.0, 128
      %295 = vxpose.xlu0.b32.cont [3/16] 0.0, 128
      %296 = vxpose.xlu0.b32.cont [4/16] 0.0, 128
      %297 = vxpose.xlu0.b32.cont [5/16] 0.0, 128
      %298 = vxpose.xlu0.b32.cont [6/16] 0.0, 128
      %299 = vxpose.xlu0.b32.cont [7/16] 0.0, 128
      %300 = vxpose.xlu0.b32.cont [8/16] 0.0, 128
      %301 = vxpose.xlu0.b32.cont [9/16] 0.0, 128
      %302 = vxpose.xlu0.b32.cont [10/16] 0.0, 128
      %303 = vxpose.xlu0.b32.cont [11/16] 0.0, 128
      %304 = vxpose.xlu0.b32.cont [12/16] 0.0, 128
      %305 = vxpose.xlu0.b32.cont [13/16] 0.0, 128
      %306 = vxpose.xlu0.b32.cont [14/16] 0.0, 128
      %307 = vxpose.xlu0.b32.cont [15/16] 0.0, 128
      %308 = vxpose.xlu0.b32.end [16/16] 0.0, 128
      %v309 = vpop.trf.xlu0
      %v310 = vpop.trf.xlu0
      %v311 = vpop.trf.xlu0
      %v312 = vpop.trf.xlu0
      %v313 = vpop.trf.xlu0
      %v314 = vpop.trf.xlu0
      %v315 = vpop.trf.xlu0
      %v316 = vpop.trf.xlu0
      %v317 = vpop.trf.xlu0
      %v318 = vpop.trf.xlu0
      %v319 = vpop.trf.xlu0
      %v320 = vpop.trf.xlu0
      %v321 = vpop.trf.xlu0
      %v322 = vpop.trf.xlu0
      %v323 = vpop.trf.xlu0
      %v324 = vpop.trf.xlu0
      %vm325 = vcmask 12288
      %326 = vst.msk [vmem:[%s212] sm:$0x1f] %vm325, %v309
      %p327 = scmp.lt.s32.totalorder %s18, 3
      %s328 = scalar_select %p327, %s18, 3
      %p329 = scmp.lt.s32.totalorder %s19, 0
      %s330 = scalar_select %p329, %s19, 0
      %p331 = scmp.lt.s32.totalorder %s20, 0
      %s332 = scalar_select %p331, %s20, 0
      %s333 = sadd.s32 %s332, %s330
      %s334 = sadd.s32 %s333, %s328
      %s335 = smul.addr %s334, 8
      %s336 = scalar_lea.vmem %s2, %s335
      // Predicated region
      $region29: #{tpu_custom_call.1} parent=27 // pred_check
        %p337 = pneg %p110
      $region30: #{tpu_custom_call.1} parent=27 // pred_check_branch
        %339 = sbr.rel (%p337) target = $region32
      $region31: #{tpu_custom_call.1} parent=27 // pred_region
        _
      $region32: #{tpu_custom_call.1} parent=27 // pred_fallthru
        _
    $region28: #{tpu_custom_call.1} parent=5 // pred_fallthru
      _
    %p340 = scmp.le.s32.totalorder 2, %s8
    // Predicated region
    $region33: #{tpu_custom_call.1} parent=5 // pred_check
      %p341 = pneg %p340
    $region34: #{tpu_custom_call.1} parent=5 // pred_check_branch
      %343 = sbr.rel (%p341) target = $region36
    $region35: #{tpu_custom_call.1} parent=5 // pred_region
      %s344 = ssub.s32 %s8, 2
      // Predicated region
      $region37: #{tpu_custom_call.1} parent=35 // pred_check
        %p345 = pneg %p116
      $region38: #{tpu_custom_call.1} parent=35 // pred_check_branch
        %347 = sbr.rel (%p345) target = $region40
      $region39: #{tpu_custom_call.1} parent=35 // pred_region
        %p348 = scmp.lt.s32.totalorder %s21, 3
        %s349 = scalar_select %p348, %s21, 3
        %p350 = scmp.lt.s32.totalorder %s22, 0
        %s351 = scalar_select %p350, %s22, 0
        %p352 = scmp.lt.s32.totalorder %s23, 0
        %s353 = scalar_select %p352, %s23, 0
        %s354 = sadd.s32 %s353, %s351
        %s355 = sadd.s32 %s354, %s349
        %s356 = smul.addr %s355, 8
        %s357 = scalar_lea.vmem %s2, %s356
      $region40: #{tpu_custom_call.1} parent=35 // pred_fallthru
        _
    $region36: #{tpu_custom_call.1} parent=5 // pred_fallthru
      _
  $region6: #{tpu_custom_call.1} parent=0 // loop_footer
    %s12 = sadd.s32 1, %s8
  $region7: #{tpu_custom_call.1} parent=0 // loop_footer_branch
    %7 = sbr.rel target = $region3
  $region8: #{tpu_custom_call.1} parent=0 // loop_exit
    _

</llo_original>
